<compile_context>
chip_gen: v7x
topology: tpu7x:2x2x1
jax: 0.10.0
libtpu: 0.0.40
codegen_flags: <defaults>
</compile_context>

<pallas_src>
import jax
import jax.numpy as jnp
from jax.experimental import pallas as pl
from jax.experimental.pallas import tpu as pltpu

LANE = 128
MAX_ROW_BLOCK = 1024   # 1024x128 f32 tile = 512 KiB per input per buffer
NUM_SHARDS = 2         # dual-TensorCore (v7x) sharding when enough blocks exist


def _loss_kernel(o_ref, m_ref, p_ref, acc_ref):
    # acc_ref: (1, 2, ROW_BLOCK, LANE) resident per-shard partial sums of squares.
    i = pl.program_id(1)

    @pl.when(i == 0)
    def _():
        acc_ref[...] = jnp.zeros_like(acc_ref)

    o = o_ref[...]
    m = m_ref[...]
    p = p_ref[...]

    d = o - p                  # global diff
    ld = (1.0 - m) * d         # local diff == (1-ms)*o - (1-ms)*p up to f32 rounding

    acc_ref[0, 0] += ld * ld   # local sum-of-squares partials (elementwise, VPU)
    acc_ref[0, 1] += d * d     # global sum-of-squares partials


def my_loss(output, ms, ps):
    """0.15 * ||(1-ms)*output - (1-ms)*ps||_F + ||output - ps||_F"""
    assert output.shape == ms.shape == ps.shape
    f32 = jnp.float32

    n = int(output.size)
    rows = -(-n // LANE)
    rows = -(-rows // 8) * 8          # sublane-align

    if rows <= MAX_ROW_BLOCK:
        row_block = rows
        nshard, steps = 1, 1
    else:
        row_block = MAX_ROW_BLOCK
        blocks = -(-rows // row_block)
        nshard = NUM_SHARDS if blocks >= NUM_SHARDS else 1
        steps = -(-blocks // nshard)
    rows_padded = nshard * steps * row_block
    n_padded = rows_padded * LANE

    def to_slab(x):
        x = jnp.ravel(x).astype(f32)
        if n_padded != n:
            # zero padding contributes exactly 0 to both sums of squares
            x = jnp.pad(x, (0, n_padded - n))
        return x.reshape(rows_padded, LANE)

    o = to_slab(output)
    m = to_slab(ms)
    p = to_slab(ps)

    in_spec = pl.BlockSpec((row_block, LANE), lambda s, i: (s * steps + i, 0))
    out_spec = pl.BlockSpec((1, 2, row_block, LANE), lambda s, i: (s, 0, 0, 0))

    partials = pl.pallas_call(
        _loss_kernel,
        out_shape=jax.ShapeDtypeStruct((nshard, 2, row_block, LANE), f32),
        grid=(nshard, steps),
        in_specs=[in_spec, in_spec, in_spec],
        out_specs=out_spec,
        compiler_params=pltpu.CompilerParams(
            dimension_semantics=("parallel", "arbitrary"),
        ),
    )(o, m, p)

    # Tiny final reduce + scalar glue (negligible vs. the mem-bound kernel).
    sums = jnp.sum(partials, axis=(0, 2, 3))   # (2,)
    local = jnp.sqrt(sums[0])
    glob = jnp.sqrt(sums[1])
    return 0.15 * local + glob


if __name__ == "__main__":
    key = jax.random.PRNGKey(0)
    k0, k1, k2 = jax.random.split(key, 3)

    # Small NCHW shapes consistent with the module's forward (image-like tensors).
    shape = (2, 4, 16, 16)
    output = jax.random.normal(k0, shape, dtype=jnp.float32)
    ps = jax.random.normal(k1, shape, dtype=jnp.float32)
    # ms is a mask-like tensor in [0, 1]
    ms = (jax.random.uniform(k2, shape, dtype=jnp.float32) > 0.5).astype(jnp.float32)

    loss_fn = jax.jit(my_loss)
    loss = jax.block_until_ready(loss_fn(output, ms, ps))

    # silent correctness check against a pure-JAX reference
    w = 1.0 - ms
    ref_local = jnp.sqrt(jnp.sum((w * output - w * ps) ** 2))
    ref_glob = jnp.sqrt(jnp.sum((output - ps) ** 2))
    ref = 0.15 * ref_local + ref_glob
    assert jnp.allclose(loss, ref, rtol=1e-5, atol=1e-5), (loss, ref)

    print("KERNEL_OK")
</pallas_src>

<mosaic_0001>
module attributes {stable_mosaic.version = 11 : i64} {
  func.func @_loss_kernel(%arg0: i32, %arg1: i32, %arg2: memref<16x128xf32, #tpu.memory_space<vmem>>, %arg3: memref<16x128xf32, #tpu.memory_space<vmem>>, %arg4: memref<16x128xf32, #tpu.memory_space<vmem>>, %arg5: memref<1x2x16x128xf32, #tpu.memory_space<vmem>>) attributes {dimension_semantics = [#tpu.dimension_semantics<parallel>, #tpu.dimension_semantics<arbitrary>], iteration_bounds = array<i64: 1, 1>, scalar_prefetch = 0 : i64, scratch_operands = 0 : i64, tpu.core_type = #tpu.core_type<tc>, window_params = [{transform_indices = @transform_0, window_bounds = array<i64: 16, 128>}, {transform_indices = @transform_1, window_bounds = array<i64: 16, 128>}, {transform_indices = @transform_2, window_bounds = array<i64: 16, 128>}, {transform_indices = @transform_3, window_bounds = array<i64: 1, 2, 16, 128>}]} {
    %c0_i32 = arith.constant 0 : i32
    %0 = arith.cmpi eq, %arg1, %c0_i32 : i32
    %1 = arith.extui %0 : i1 to i32
    %c0_i32_0 = arith.constant 0 : i32
    %2 = arith.cmpi ne, %1, %c0_i32_0 : i32
    scf.if %2 {
      %cst_21 = arith.constant 0.000000e+00 : f32
      %24 = vector.broadcast %cst_21 : f32 to vector<1x2x16x128xf32>
      %c0_22 = arith.constant 0 : index
      %c0_23 = arith.constant 0 : index
      %c0_24 = arith.constant 0 : index
      %c0_25 = arith.constant 0 : index
      %25 = vector.load %arg5[%c0_22, %c0_23, %c0_24, %c0_25] : memref<1x2x16x128xf32, #tpu.memory_space<vmem>>, vector<1x2x16x128xf32>
      tpu.vector_store %arg5[%c0_22, %c0_23, %c0_24, %c0_25], %24 {strides = array<i32>} : memref<1x2x16x128xf32, #tpu.memory_space<vmem>>, vector<1x2x16x128xf32>,
    } else {
    }
    %c0 = arith.constant 0 : index
    %c0_1 = arith.constant 0 : index
    %3 = vector.load %arg2[%c0, %c0_1] : memref<16x128xf32, #tpu.memory_space<vmem>>, vector<16x128xf32>
    %c0_2 = arith.constant 0 : index
    %c0_3 = arith.constant 0 : index
    %4 = vector.load %arg3[%c0_2, %c0_3] : memref<16x128xf32, #tpu.memory_space<vmem>>, vector<16x128xf32>
    %c0_4 = arith.constant 0 : index
    %c0_5 = arith.constant 0 : index
    %5 = vector.load %arg4[%c0_4, %c0_5] : memref<16x128xf32, #tpu.memory_space<vmem>>, vector<16x128xf32>
    %6 = arith.subf %3, %5 : vector<16x128xf32>
    %cst = arith.constant 1.000000e+00 : f32
    %7 = vector.broadcast %cst : f32 to vector<16x128xf32>
    %8 = arith.subf %7, %4 : vector<16x128xf32>
    %9 = arith.mulf %8, %6 : vector<16x128xf32>
    %c0_6 = arith.constant 0 : index
    %c0_7 = arith.constant 0 : index
    %c0_8 = arith.constant 0 : index
    %c0_9 = arith.constant 0 : index
    %10 = vector.load %arg5[%c0_6, %c0_7, %c0_8, %c0_9] : memref<1x2x16x128xf32, #tpu.memory_space<vmem>>, vector<1x1x16x128xf32>
    %11 = vector.shape_cast %10 : vector<1x1x16x128xf32> to vector<16x128xf32>
    %12 = arith.mulf %9, %9 : vector<16x128xf32>
    %13 = arith.addf %11, %12 : vector<16x128xf32>
    %c0_10 = arith.constant 0 : index
    %c0_11 = arith.constant 0 : index
    %c0_12 = arith.constant 0 : index
    %c0_13 = arith.constant 0 : index
    %14 = vector.load %arg5[%c0_10, %c0_11, %c0_12, %c0_13] : memref<1x2x16x128xf32, #tpu.memory_space<vmem>>, vector<1x1x16x128xf32>
    %15 = vector.shape_cast %14 : vector<1x1x16x128xf32> to vector<16x128xf32>
    %16 = vector.shape_cast %13 : vector<16x128xf32> to vector<1x1x16x128xf32>
    tpu.vector_store %arg5[%c0_10, %c0_11, %c0_12, %c0_13], %16 {strides = array<i32>} : memref<1x2x16x128xf32, #tpu.memory_space<vmem>>, vector<1x1x16x128xf32>,
    %c0_14 = arith.constant 0 : index
    %c1 = arith.constant 1 : index
    %c0_15 = arith.constant 0 : index
    %c0_16 = arith.constant 0 : index
    %17 = vector.load %arg5[%c0_14, %c1, %c0_15, %c0_16] : memref<1x2x16x128xf32, #tpu.memory_space<vmem>>, vector<1x1x16x128xf32>
    %18 = vector.shape_cast %17 : vector<1x1x16x128xf32> to vector<16x128xf32>
    %19 = arith.mulf %6, %6 : vector<16x128xf32>
    %20 = arith.addf %18, %19 : vector<16x128xf32>
    %c0_17 = arith.constant 0 : index
    %c1_18 = arith.constant 1 : index
    %c0_19 = arith.constant 0 : index
    %c0_20 = arith.constant 0 : index
    %21 = vector.load %arg5[%c0_17, %c1_18, %c0_19, %c0_20] : memref<1x2x16x128xf32, #tpu.memory_space<vmem>>, vector<1x1x16x128xf32>
    %22 = vector.shape_cast %21 : vector<1x1x16x128xf32> to vector<16x128xf32>
    %23 = vector.shape_cast %20 : vector<16x128xf32> to vector<1x1x16x128xf32>
    tpu.vector_store %arg5[%c0_17, %c1_18, %c0_19, %c0_20], %23 {strides = array<i32>} : memref<1x2x16x128xf32, #tpu.memory_space<vmem>>, vector<1x1x16x128xf32>,
    return
  }
  func.func @transform_0(%arg0: i32, %arg1: i32) -> (i32, i32) {
    %c1_i32 = arith.constant 1 : i32
    %0 = arith.muli %arg0, %c1_i32 : i32
    %1 = arith.addi %0, %arg1 : i32
    %c0_i32 = arith.constant 0 : i32
    %c0_i32_0 = arith.constant 0 : i32
    return %1, %c0_i32 : i32, i32
  }
  func.func @transform_1(%arg0: i32, %arg1: i32) -> (i32, i32) {
    %c1_i32 = arith.constant 1 : i32
    %0 = arith.muli %arg0, %c1_i32 : i32
    %1 = arith.addi %0, %arg1 : i32
    %c0_i32 = arith.constant 0 : i32
    %c0_i32_0 = arith.constant 0 : i32
    return %1, %c0_i32 : i32, i32
  }
  func.func @transform_2(%arg0: i32, %arg1: i32) -> (i32, i32) {
    %c1_i32 = arith.constant 1 : i32
    %0 = arith.muli %arg0, %c1_i32 : i32
    %1 = arith.addi %0, %arg1 : i32
    %c0_i32 = arith.constant 0 : i32
    %c0_i32_0 = arith.constant 0 : i32
    return %1, %c0_i32 : i32, i32
  }
  func.func @transform_3(%arg0: i32, %arg1: i32) -> (i32, i32, i32, i32) {
    %c0_i32 = arith.constant 0 : i32
    %c0_i32_0 = arith.constant 0 : i32
    %c0_i32_1 = arith.constant 0 : i32
    %c0_i32_2 = arith.constant 0 : i32
    return %arg0, %c0_i32, %c0_i32_0, %c0_i32_1 : i32, i32, i32, i32
  }
}

</mosaic_0001>

<llo_original>
// kernel: my_loss.1
$region0: #{my_loss.1}
  #allocation0 [shape = 'u32[]', space=smem, size = 0x4, offset = 0x4, fixed_abs, tag = 'smem constant byte address 0x4 - core index']
  #allocation1 [shape = 'u32[144,128]{1,0:T(1,128)}', space=vmem, size = 0x12000, scoped, tag = 'internal scratch']
  %s0 = inlined_call_operand.vmem [shape: f32[16,128], index: 0, kind: input, shape index: {}]
  %s1 = inlined_call_operand.vmem [shape: f32[16,128], index: 1, kind: input, shape index: {}]
  %s2 = inlined_call_operand.vmem [shape: f32[16,128], index: 2, kind: input, shape index: {}]
  %s3 = inlined_call_operand.vmem [shape: f32[1,2,16,128], index: 3, kind: output, shape index: {}]
  %s4 = sld [smem:[#allocation0]]
  $region26: #{my_loss.1} parent=0
    _
  %s6 = ssub.s32 1, %s4
  %s7 = scalar_select 0, %s6, %s4
  // Predicated region
  $region2: #{my_loss.1} parent=0 // pred_check
    _
  $region3: #{my_loss.1} parent=0 // pred_check_branch
    %9 = sbr.rel (0) target = $region5
  $region4: #{my_loss.1} parent=0 // pred_region
    %s10 = sadd.s32 0, 0
    %s11 = smul.u32 2, %s10
    %p12 = scmp.lt.s32.totalorder %s11, 1
    %s13 = scalar_select %p12, %s11, 1
    %s14 = smul.addr %s13, 8
    %s15 = scalar_lea.vmem %s0, %s14
    %s16 = sadd.s32 0, 0
    %s17 = smul.u32 2, %s16
  $region5: #{my_loss.1} parent=0 // pred_fallthru
    _
  // Predicated region
  $region6: #{my_loss.1} parent=0 // pred_check
    _
  $region7: #{my_loss.1} parent=0 // pred_check_branch
    %19 = sbr.rel (0) target = $region9
  $region8: #{my_loss.1} parent=0 // pred_region
    %s20 = sadd.s32 0, 0
    %s21 = smul.u32 2, %s20
    %p22 = scmp.lt.s32.totalorder %s21, 1
    %s23 = scalar_select %p22, %s21, 1
    %s24 = smul.addr %s23, 8
    %s25 = scalar_lea.vmem %s1, %s24
    %s26 = sadd.s32 0, 0
    %s27 = smul.u32 2, %s26
  $region9: #{my_loss.1} parent=0 // pred_fallthru
    _
  // Predicated region
  $region10: #{my_loss.1} parent=0 // pred_check
    _
  $region11: #{my_loss.1} parent=0 // pred_check_branch
    %29 = sbr.rel (0) target = $region13
  $region12: #{my_loss.1} parent=0 // pred_region
    %s30 = sadd.s32 0, 0
    %s31 = smul.u32 2, %s30
    %p32 = scmp.lt.s32.totalorder %s31, 1
    %s33 = scalar_select %p32, %s31, 1
    %s34 = smul.addr %s33, 8
    %s35 = scalar_lea.vmem %s2, %s34
    %s36 = sadd.s32 0, 0
    %s37 = smul.u32 2, %s36
  $region13: #{my_loss.1} parent=0 // pred_fallthru
    _
  %s38 = sadd.s32 0, 0
  %s39 = smul.u32 2, %s38
  %p40 = scmp.lt.s32.totalorder %s39, 1
  %s41 = scalar_select %p40, %s39, 1
  %s42 = smul.addr %s41, 8
  %s43 = scalar_lea.vmem %s0, %s42
  %s44 = sadd.s32 0, 0
  %s45 = smul.u32 2, %s44
  %p46 = scmp.lt.s32.totalorder %s45, 1
  %s47 = scalar_select %p46, %s45, 1
  %s48 = smul.addr %s47, 8
  %s49 = scalar_lea.vmem %s1, %s48
  %s50 = sadd.s32 0, 0
  %s51 = smul.u32 2, %s50
  %p52 = scmp.lt.s32.totalorder %s51, 1
  %s53 = scalar_select %p52, %s51, 1
  %s54 = smul.addr %s53, 8
  %s55 = scalar_lea.vmem %s2, %s54
  %s56 = sadd.s32 0, 0
  %s57 = smul.u32 2, %s56
  %p58 = scmp.lt.s32.totalorder %s57, 1
  %s59 = scalar_select %p58, %s57, 1
  %s60 = smul.addr %s59, 8
  %s61 = scalar_lea.vmem %s0, %s60
  %s62 = sadd.s32 0, 0
  %s63 = smul.u32 2, %s62
  %s64 = sadd.s32 0, 0
  %s65 = smul.u32 2, %s64
  %p66 = scmp.lt.s32.totalorder %s65, 1
  %s67 = scalar_select %p66, %s65, 1
  %s68 = smul.addr %s67, 8
  %s69 = scalar_lea.vmem %s1, %s68
  %s70 = sadd.s32 0, 0
  %s71 = smul.u32 2, %s70
  %s72 = sadd.s32 0, 0
  %s73 = smul.u32 2, %s72
  %p74 = scmp.lt.s32.totalorder %s73, 1
  %s75 = scalar_select %p74, %s73, 1
  %s76 = smul.addr %s75, 8
  %s77 = scalar_lea.vmem %s2, %s76
  %s78 = sadd.s32 0, 0
  %s79 = smul.u32 2, %s78
  %p80 = scmp.eq.s32.totalorder 0, 0
  // Predicated region
  $region14: #{my_loss.1} parent=0 // pred_check
    %p81 = pneg %p80
  $region15: #{my_loss.1} parent=0 // pred_check_branch
    %83 = sbr.rel (%p81) target = $region17
  $region16: #{my_loss.1} parent=0 // pred_region
    %84 = vst [vmem:[%s3] sm:$0xff] 0.0
    %85 = vst [vmem:[%s3 + $0x8] sm:$0xff] 0.0
    %86 = vst [vmem:[%s3 + $0x10] sm:$0xff] 0.0
    %87 = vst [vmem:[%s3 + $0x18] sm:$0xff] 0.0
  $region17: #{my_loss.1} parent=0 // pred_fallthru
    _
  %v88 = vld [vmem:[%s61] sm:$0xff]
  %v89 = vld [vmem:[%s61 + $0x8] sm:$0xff]
  %v90 = vld [vmem:[%s69] sm:$0xff]
  %v91 = vld [vmem:[%s69 + $0x8] sm:$0xff]
  %v92 = vld [vmem:[%s77] sm:$0xff]
  %v93 = vld [vmem:[%s77 + $0x8] sm:$0xff]
  %v94 = vsub.f32 %v88, %v92
  %v95 = vsub.f32 %v89, %v93
  %v96 = vsub.f32 1.0, %v90
  %v97 = vsub.f32 1.0, %v91
  %v98 = vmul.f32 %v96, %v94
  %v99 = vmul.f32 %v97, %v95
  %v100 = vld [vmem:[%s3] sm:$0xff]
  %v101 = vld [vmem:[%s3 + $0x8] sm:$0xff]
  %v102 = vmul.f32 %v98, %v98
  %v103 = vmul.f32 %v99, %v99
  %v104 = vadd.f32 %v100, %v102
  %v105 = vadd.f32 %v101, %v103
  %106 = vst [vmem:[%s3] sm:$0xff] %v104
  %107 = vst [vmem:[%s3 + $0x8] sm:$0xff] %v105
  %s108 = scalar_lea.vmem %s3, 16
  %v109 = vld [vmem:[%s108] sm:$0xff]
  %v110 = vld [vmem:[%s108 + $0x8] sm:$0xff]
  %v111 = vmul.f32 %v94, %v94
  %v112 = vmul.f32 %v95, %v95
  %v113 = vadd.f32 %v109, %v111
  %v114 = vadd.f32 %v110, %v112
  %115 = vst [vmem:[%s108] sm:$0xff] %v113
  %116 = vst [vmem:[%s108 + $0x8] sm:$0xff] %v114
  // Predicated region
  $region18: #{my_loss.1} parent=0 // pred_check
    _
  $region19: #{my_loss.1} parent=0 // pred_check_branch
    %118 = sbr.rel (0) target = $region21
  $region20: #{my_loss.1} parent=0 // pred_region
    _
  $region21: #{my_loss.1} parent=0 // pred_fallthru
    _
  // Predicated region
  $region22: #{my_loss.1} parent=0 // pred_check
    _
  $region23: #{my_loss.1} parent=0 // pred_check_branch
    %120 = sbr.rel (0) target = $region25
  $region24: #{my_loss.1} parent=0 // pred_region
    _
  $region25: #{my_loss.1} parent=0 // pred_fallthru
    _

</llo_original>
